<compile_context>
chip_gen: v6e
topology: v6e:2x2x1
jax: 0.10.0
libtpu: 0.0.40
codegen_flags: <defaults>
</compile_context>

<pallas_src>
import functools

import jax
import jax.numpy as jnp
from jax.experimental import pallas as pl
from jax.experimental.pallas import tpu as pltpu


def _se_kernel(x_ref, a_ref, b_ref, o_ref, *, use_mxu):
    """One grid step: TB batch elements, each one lane-dense row of C*L values.

    x_ref: (1, TB, CL)  input slab (row-major view of (TB, C, L))
    a_ref: (H, CL) [VPU path] or (CL, H) [MXU path]  -- avg-pool folded into FC1
    b_ref: (H, CL)                                   -- FC2 rows lane-replicated
    o_ref: (1, TB, CL)
    """
    x = x_ref[0]                       # (TB, CL), f32
    bm = b_ref[...]                    # (H, CL)

    if use_mxu:
        # Only worthwhile with many rows per step / larger hidden dim.
        h = jnp.dot(x, a_ref[...], preferred_element_type=jnp.float32)   # (TB, H)
        h = jnp.maximum(h, 0.0)
        z = jnp.dot(h, bm, preferred_element_type=jnp.float32)           # (TB, CL)
    else:
        # Tiny excitation MLP: keep it off the MXU (VPU multiplies + lane reduce).
        a = a_ref[...]                 # (H, CL)
        hidden = a.shape[0]            # static at trace time
        z = None
        for j in range(hidden):        # tiny static unroll (H = C // reduction)
            hj = jnp.sum(x * a[j:j + 1, :], axis=-1, keepdims=True)      # (TB, 1)
            hj = jnp.maximum(hj, 0.0)                                    # ReLU
            t = hj * bm[j:j + 1, :]                                      # (TB, CL)
            z = t if z is None else z + t

    scale = jax.nn.sigmoid(z)          # exp + reciprocal on the EUP
    o_ref[0] = (x * scale).astype(o_ref.dtype)   # lane-dense rescale + store


def _pick_tb(batch, slab_elems, itemsize, vmem_budget_bytes):
    """Largest divisor of `batch` whose double-buffered in+out slabs fit the budget,
    while keeping >= 2 grid steps (so both v7x TensorCores get work)."""
    cap = max(1, vmem_budget_bytes // (4 * slab_elems * itemsize))
    limit = min(cap, batch // 2) if batch >= 2 else 1
    limit = max(limit, 1)
    tb = 1
    for d in range(1, batch + 1):
        if batch % d == 0 and d <= limit:
            tb = d
    return tb


def se_layer(inp, w1, w2, batch_size, *, vmem_budget_bytes=32 * 1024 * 1024):
    """inp: (N, C); w1: (C//r, C); w2: (C, C//r). Returns (N, C), matching torch."""
    n, dim = inp.shape
    assert n % batch_size == 0, "N must be divisible by batch_size (torch .view requires it)"
    seq_len = n // batch_size
    hidden = w1.shape[0]
    cl = dim * seq_len                               # contiguous per-batch slab length

    tb = _pick_tb(batch_size, cl, jnp.dtype(inp.dtype).itemsize, vmem_budget_bytes)
    g = batch_size // tb

    # Row-major (torch .view) reshape: each batch element is one contiguous,
    # lane-dense row of C*L values. (If C*L is not a multiple of 128 this is still
    # legal -- block dims equal full array extents -- just with masked lanes.)
    x4 = inp.reshape(g, tb, cl)

    # Fold the average pool into FC1 and lane-replicate FC2 rows:
    #   A[j, c*L + l]  = W1[j, c] / L   ->  relu(x2 @ A.T) == relu(mean(x3, -1) @ W1.T)
    #   Bm[j, c*L + l] = W2[c, j]       ->  sigmoid(h @ Bm) is the gate already
    #                                       broadcast into the lane-dense layout.
    a = (jnp.repeat(w1, seq_len, axis=1) * jnp.float32(1.0 / seq_len)).astype(jnp.float32)
    bm = jnp.repeat(w2.T, seq_len, axis=1).astype(jnp.float32)

    use_mxu = (tb >= 128) or (hidden > 8)
    if use_mxu:
        a = a.T                                      # (CL, H) for a plain jnp.dot

    kernel = functools.partial(_se_kernel, use_mxu=use_mxu)

    out4 = pl.pallas_call(
        kernel,
        out_shape=jax.ShapeDtypeStruct((g, tb, cl), inp.dtype),
        grid_spec=pltpu.PrefetchScalarGridSpec(
            num_scalar_prefetch=0,
            grid=(g,),
            in_specs=[
                pl.BlockSpec((1, tb, cl), lambda i: (i, 0, 0)),
                pl.BlockSpec(a.shape, lambda i: (0, 0)),
                pl.BlockSpec(bm.shape, lambda i: (0, 0)),
            ],
            out_specs=pl.BlockSpec((1, tb, cl), lambda i: (i, 0, 0)),
        ),
        compiler_params=pltpu.CompilerParams(
            dimension_semantics=("parallel",),
            vmem_limit_bytes=48 * 1024 * 1024,
        ),
    )(x4, a, bm)

    return out4.reshape(-1, dim)


def se_layer_ref(inp, w1, w2, batch_size):
    dim = inp.shape[-1]
    x3 = inp.reshape(batch_size, dim, -1)
    m = x3.mean(axis=-1)
    h = jnp.maximum(m @ w1.T, 0.0)
    y = jax.nn.sigmoid(h @ w2.T)
    return (x3 * y[:, :, None]).reshape(-1, dim)


if __name__ == "__main__":
    # Small shapes consistent with the module: channel=16, reduction=8 -> hidden=2.
    # batch_size=16, L=16 -> per-batch slab C*L = 256 lanes (lane-dense), TB=8 rows
    # per grid step (full sublanes), grid=(2,) parallel steps.
    batch_size = 16
    channel = 16
    reduction = 8
    hidden = channel // reduction
    seq_len = 16                        # "points per batch" after the torch .view
    n_rows = batch_size * seq_len       # rows of the flat (N, C) input

    key = jax.random.PRNGKey(0)
    k_in, k_w1, k_w2 = jax.random.split(key, 3)
    inp = jax.random.normal(k_in, (n_rows, channel), dtype=jnp.float32)
    w1 = jax.random.normal(k_w1, (hidden, channel), dtype=jnp.float32) * 0.1
    w2 = jax.random.normal(k_w2, (channel, hidden), dtype=jnp.float32) * 0.1

    out = se_layer(inp, w1, w2, batch_size)
    out = jax.block_until_ready(out)

    ref = se_layer_ref(inp, w1, w2, batch_size)
    assert out.shape == ref.shape, (out.shape, ref.shape)
    assert jnp.allclose(out, ref, atol=2e-5, rtol=1e-4), float(jnp.max(jnp.abs(out - ref)))

    print("KERNEL_OK")
</pallas_src>

<mosaic_0001>
module attributes {stable_mosaic.version = 11 : i64} {
  func.func @_se_kernel(%arg0: i32, %arg1: memref<1x8x256xf32, #tpu.memory_space<vmem>>, %arg2: memref<2x256xf32, #tpu.memory_space<vmem>>, %arg3: memref<2x256xf32, #tpu.memory_space<vmem>>, %arg4: memref<1x8x256xf32, #tpu.memory_space<vmem>>) attributes {dimension_semantics = [#tpu.dimension_semantics<parallel>], iteration_bounds = array<i64: 2>, scalar_prefetch = 0 : i64, scratch_operands = 0 : i64, tpu.core_type = #tpu.core_type<tc>, window_params = [{transform_indices = @transform_0, window_bounds = array<i64: 1, 8, 256>}, {pipeline_mode = #tpu.pipeline_mode<synchronous>, transform_indices = @transform_1, window_bounds = array<i64: 2, 256>}, {pipeline_mode = #tpu.pipeline_mode<synchronous>, transform_indices = @transform_2, window_bounds = array<i64: 2, 256>}, {transform_indices = @transform_3, window_bounds = array<i64: 1, 8, 256>}]} {
    %c0 = arith.constant 0 : index
    %c0_0 = arith.constant 0 : index
    %c0_1 = arith.constant 0 : index
    %0 = vector.load %arg1[%c0, %c0_0, %c0_1] : memref<1x8x256xf32, #tpu.memory_space<vmem>>, vector<1x8x256xf32>
    %1 = vector.shape_cast %0 : vector<1x8x256xf32> to vector<8x256xf32>
    %c0_2 = arith.constant 0 : index
    %c0_3 = arith.constant 0 : index
    %2 = vector.load %arg3[%c0_2, %c0_3] : memref<2x256xf32, #tpu.memory_space<vmem>>, vector<2x256xf32>
    %c0_4 = arith.constant 0 : index
    %c0_5 = arith.constant 0 : index
    %3 = vector.load %arg2[%c0_4, %c0_5] : memref<2x256xf32, #tpu.memory_space<vmem>>, vector<2x256xf32>
    %4 = vector.extract_strided_slice %3 {offsets = [0, 0], sizes = [1, 256], strides = [1, 1]} : vector<2x256xf32> to vector<1x256xf32>
    %5 = vector.broadcast %4 : vector<1x256xf32> to vector<8x256xf32>
    %6 = arith.mulf %1, %5 : vector<8x256xf32>
    %cst = arith.constant dense<0.000000e+00> : vector<8xf32>
    %7 = vector.multi_reduction <add>, %6, %cst [1] : vector<8x256xf32> to vector<8xf32>
    %8 = vector.shape_cast %7 : vector<8xf32> to vector<8x1xf32>
    %cst_6 = arith.constant 0.000000e+00 : f32
    %9 = vector.broadcast %cst_6 : f32 to vector<8x1xf32>
    %10 = arith.maximumf %8, %9 : vector<8x1xf32>
    %11 = vector.extract_strided_slice %2 {offsets = [0, 0], sizes = [1, 256], strides = [1, 1]} : vector<2x256xf32> to vector<1x256xf32>
    %12 = vector.broadcast %10 : vector<8x1xf32> to vector<8x256xf32>
    %13 = vector.broadcast %11 : vector<1x256xf32> to vector<8x256xf32>
    %14 = arith.mulf %12, %13 : vector<8x256xf32>
    %15 = vector.extract_strided_slice %3 {offsets = [1, 0], sizes = [1, 256], strides = [1, 1]} : vector<2x256xf32> to vector<1x256xf32>
    %16 = vector.broadcast %15 : vector<1x256xf32> to vector<8x256xf32>
    %17 = arith.mulf %1, %16 : vector<8x256xf32>
    %cst_7 = arith.constant dense<0.000000e+00> : vector<8xf32>
    %18 = vector.multi_reduction <add>, %17, %cst_7 [1] : vector<8x256xf32> to vector<8xf32>
    %19 = vector.shape_cast %18 : vector<8xf32> to vector<8x1xf32>
    %cst_8 = arith.constant 0.000000e+00 : f32
    %20 = vector.broadcast %cst_8 : f32 to vector<8x1xf32>
    %21 = arith.maximumf %19, %20 : vector<8x1xf32>
    %22 = vector.extract_strided_slice %2 {offsets = [1, 0], sizes = [1, 256], strides = [1, 1]} : vector<2x256xf32> to vector<1x256xf32>
    %23 = vector.broadcast %21 : vector<8x1xf32> to vector<8x256xf32>
    %24 = vector.broadcast %22 : vector<1x256xf32> to vector<8x256xf32>
    %25 = arith.mulf %23, %24 : vector<8x256xf32>
    %26 = arith.addf %14, %25 : vector<8x256xf32>
    %27 = arith.negf %26 : vector<8x256xf32>
    %28 = math.exp %27 : vector<8x256xf32>
    %cst_9 = arith.constant 1.000000e+00 : f32
    %29 = vector.broadcast %cst_9 : f32 to vector<8x256xf32>
    %30 = arith.addf %29, %28 : vector<8x256xf32>
    %31 = arith.divf %29, %30 : vector<8x256xf32>
    %32 = arith.mulf %1, %31 : vector<8x256xf32>
    %c0_10 = arith.constant 0 : index
    %c0_11 = arith.constant 0 : index
    %c0_12 = arith.constant 0 : index
    %33 = vector.load %arg4[%c0_10, %c0_11, %c0_12] : memref<1x8x256xf32, #tpu.memory_space<vmem>>, vector<1x8x256xf32>
    %34 = vector.shape_cast %33 : vector<1x8x256xf32> to vector<8x256xf32>
    %35 = vector.shape_cast %32 : vector<8x256xf32> to vector<1x8x256xf32>
    tpu.vector_store %arg4[%c0_10, %c0_11, %c0_12], %35 {strides = array<i32>} : memref<1x8x256xf32, #tpu.memory_space<vmem>>, vector<1x8x256xf32>,
    return
  }
  func.func @transform_0(%arg0: i32) -> (i32, i32, i32) {
    %c0_i32 = arith.constant 0 : i32
    %c0_i32_0 = arith.constant 0 : i32
    %c0_i32_1 = arith.constant 0 : i32
    return %arg0, %c0_i32, %c0_i32_0 : i32, i32, i32
  }
  func.func @transform_1(%arg0: i32) -> (i32, i32) {
    %c0_i32 = arith.constant 0 : i32
    %c0_i32_0 = arith.constant 0 : i32
    %c0_i32_1 = arith.constant 0 : i32
    return %c0_i32, %c0_i32_0 : i32, i32
  }
  func.func @transform_2(%arg0: i32) -> (i32, i32) {
    %c0_i32 = arith.constant 0 : i32
    %c0_i32_0 = arith.constant 0 : i32
    %c0_i32_1 = arith.constant 0 : i32
    return %c0_i32, %c0_i32_0 : i32, i32
  }
  func.func @transform_3(%arg0: i32) -> (i32, i32, i32) {
    %c0_i32 = arith.constant 0 : i32
    %c0_i32_0 = arith.constant 0 : i32
    %c0_i32_1 = arith.constant 0 : i32
    return %arg0, %c0_i32, %c0_i32_0 : i32, i32, i32
  }
}

</mosaic_0001>

<llo_original>
// kernel: tpu_custom_call.1
$region0: #{tpu_custom_call.1}
  #allocation0 [shape = 'u32[]', space=smem, size = 0x4, offset = 0x4, fixed_abs, tag = 'smem constant byte address 0x4 - core index']
  #allocation1 [shape = 'u32[144,128]{1,0:T(1,128)}', space=vmem, size = 0x12000, scoped, tag = 'internal scratch']
  %s0 = inlined_call_operand.hbm [shape: f32[2,8,256], index: 0, kind: input, shape index: {}]
  %s1 = inlined_call_operand.hbm [shape: f32[2,256], index: 1, kind: input, shape index: {}]
  %s2 = inlined_call_operand.hbm [shape: f32[2,256], index: 2, kind: input, shape index: {}]
  %s3 = inlined_call_operand.hbm [shape: f32[2,8,256], index: 3, kind: output, shape index: {}]
  %s4 = sld [smem:[#allocation0]]
  $region57: #{tpu_custom_call.1} parent=0
    _
  %s6 = ssub.s32 1, %s4
  %s7 = scalar_select 0, %s6, %s4
  $region1: #{tpu_custom_call.1} parent=0
    #allocation2 [shape = 'u8[16384]{0}', space=vmem, size = 0x4000, scoped, tag = 'input window, operand 0']
    #allocation3 [shape = 's32[2]{0}', space=sflag, size = 0x8, scoped, tag = 'scoped memory for tpu_custom_call.1']
    #allocation4 [shape = 's32[2]{0}', space=sflag, size = 0x8, scoped, tag = 'scoped memory for tpu_custom_call.1']
    #allocation5 [shape = 'u8[2048]{0}', space=vmem, size = 0x800, scoped, tag = 'input window, operand 1, single buffered']
    #allocation6 [shape = 's32[1]{0}', space=sflag, size = 0x4, scoped, tag = 'scoped memory for tpu_custom_call.1']
    #allocation7 [shape = 'u8[2048]{0}', space=vmem, size = 0x800, scoped, tag = 'input window, operand 2, single buffered']
    #allocation8 [shape = 'u8[16384]{0}', space=vmem, size = 0x4000, scoped, tag = 'output window, operand 0']
    %8 = vsyncpa [#allocation3], 0
    %s9 = scalar_lea.sflag [#allocation3], 1
    %10 = vsyncpa %s9, 0
    %11 = vsyncpa [#allocation6], 0
    %12 = vsyncpa [#allocation4], 0
    %s13 = scalar_lea.sflag [#allocation4], 1
    %14 = vsyncpa %s13, 0
    loop: start=0, step=1, limit=4
    $region2: #{tpu_custom_call.1} parent=1 // loop_pre_header
      _
    $region3: #{tpu_custom_call.1} parent=1 // loop_header
      %s16 = sphi 0, %s20
      %p17 = scmp.ge.s32.totalorder %s16, 4
      %s26 = sphi 0, %s28
      %s29 = sphi 0, %s26
      %s30 = sphi 0, %s29
      %s46 = sphi 0, %s30
      %s50 = sphi 0, %s50
      %s52 = sphi 0, %s50
      %s53 = sphi 0, %s52
      %s67 = sphi 0, %s53
      %s71 = sphi 0, %s71
      %s73 = sphi 0, %s71
      %s74 = sphi 0, %s73
      %s88 = sphi 0, %s74
      %s94 = sphi 0, %s96
      %s97 = sphi 0, %s94
      %s98 = sphi 0, %s97
      %s114 = sphi 0, %s98
    $region4: #{tpu_custom_call.1} parent=1 // loop_header_branch
      %19 = sbr.rel (%p17) target = $region8
    $region5: #{tpu_custom_call.1} parent=1 // loop_body
      %s21 = ssub.s32 %s16, 1
      %s22 = ssub.s32 %s16, 2
      %s23 = sadd.s32 %s16, 1
      %s24 = ssub.s32 %s16, %s23
      %p25 = scmp.eq.s32.totalorder %s24, 0
      %s27 = sadd.s32 %s26, 1
      %s28 = scalar_select %p25, %s26, %s27
      %p31 = pneg %p25
      %p32 = scmp.eq.s32.totalorder %s16, 1
      %p33 = por %p31, %p32
      %p34 = scmp.ne.s32.totalorder %s26, %s29
      %p35 = scmp.eq.s32.totalorder %s16, 0
      %p36 = por %p34, %p35
      %p37 = scmp.ne.s32.totalorder %s26, %s29
      %p38 = scmp.eq.s32.totalorder %s21, 1
      %p39 = por %p37, %p38
      %p40 = scmp.ne.s32.totalorder %s29, %s30
      %p41 = scmp.eq.s32.totalorder %s21, 0
      %p42 = por %p40, %p41
      %p43 = scmp.ne.s32.totalorder %s29, %s30
      %p44 = scmp.eq.s32.totalorder %s22, 1
      %p45 = por %p43, %p44
      %p47 = scmp.ne.s32.totalorder %s30, %s46
      %p48 = scmp.eq.s32.totalorder %s22, 0
      %p49 = por %p47, %p48
      %s51 = sadd.s32 %s50, 1
      %p54 = scmp.eq.s32.totalorder %s16, 1
      %p55 = scmp.ne.s32.totalorder %s50, %s52
      %p56 = scmp.eq.s32.totalorder %s16, 0
      %p57 = por %p55, %p56
      %p58 = scmp.ne.s32.totalorder %s50, %s52
      %p59 = scmp.eq.s32.totalorder %s21, 1
      %p60 = por %p58, %p59
      %p61 = scmp.ne.s32.totalorder %s52, %s53
      %p62 = scmp.eq.s32.totalorder %s21, 0
      %p63 = por %p61, %p62
      %p64 = scmp.ne.s32.totalorder %s52, %s53
      %p65 = scmp.eq.s32.totalorder %s22, 1
      %p66 = por %p64, %p65
      %p68 = scmp.ne.s32.totalorder %s53, %s67
      %p69 = scmp.eq.s32.totalorder %s22, 0
      %p70 = por %p68, %p69
      %s72 = sadd.s32 %s71, 1
      %p75 = scmp.eq.s32.totalorder %s16, 1
      %p76 = scmp.ne.s32.totalorder %s71, %s73
      %p77 = scmp.eq.s32.totalorder %s16, 0
      %p78 = por %p76, %p77
      %p79 = scmp.ne.s32.totalorder %s71, %s73
      %p80 = scmp.eq.s32.totalorder %s21, 1
      %p81 = por %p79, %p80
      %p82 = scmp.ne.s32.totalorder %s73, %s74
      %p83 = scmp.eq.s32.totalorder %s21, 0
      %p84 = por %p82, %p83
      %p85 = scmp.ne.s32.totalorder %s73, %s74
      %p86 = scmp.eq.s32.totalorder %s22, 1
      %p87 = por %p85, %p86
      %p89 = scmp.ne.s32.totalorder %s74, %s88
      %p90 = scmp.eq.s32.totalorder %s22, 0
      %p91 = por %p89, %p90
      %s92 = ssub.s32 %s16, %s23
      %p93 = scmp.eq.s32.totalorder %s92, 0
      %s95 = sadd.s32 %s94, 1
      %s96 = scalar_select %p93, %s94, %s95
      %p99 = pneg %p93
      %p100 = scmp.eq.s32.totalorder %s16, 1
      %p101 = por %p99, %p100
      %p102 = scmp.ne.s32.totalorder %s94, %s97
      %p103 = scmp.eq.s32.totalorder %s16, 0
      %p104 = por %p102, %p103
      %p105 = scmp.ne.s32.totalorder %s94, %s97
      %p106 = scmp.eq.s32.totalorder %s21, 1
      %p107 = por %p105, %p106
      %p108 = scmp.ne.s32.totalorder %s97, %s98
      %p109 = scmp.eq.s32.totalorder %s21, 0
      %p110 = por %p108, %p109
      %p111 = scmp.ne.s32.totalorder %s97, %s98
      %p112 = scmp.eq.s32.totalorder %s22, 1
      %p113 = por %p111, %p112
      %p115 = scmp.ne.s32.totalorder %s98, %s114
      %p116 = scmp.eq.s32.totalorder %s22, 0
      %p117 = por %p115, %p116
      %p118 = scmp.le.s32.totalorder 1, %s16
      %p119 = scmp.lt.s32.totalorder %s16, 3
      %p120 = pnand %p118, %p119
      %p121 = pneg %p120
      // Predicated region
      $region9: #{tpu_custom_call.1} parent=5 // pred_check
        _
      $region10: #{tpu_custom_call.1} parent=5 // pred_check_branch
        %123 = sbr.rel (%p120) target = $region12
      $region11: #{tpu_custom_call.1} parent=5 // pred_region
        %s124 = ssub.s32 %s16, 1
        // Predicated region
        $region13: #{tpu_custom_call.1} parent=11 // pred_check
          %p125 = pneg %p63
        $region14: #{tpu_custom_call.1} parent=11 // pred_check_branch
          %127 = sbr.rel (%p125) target = $region16
        $region15: #{tpu_custom_call.1} parent=11 // pred_region
          %s129 = ssub.s32 64, 64
          %130 = vsyncadd [#allocation6], %s129
          %s132 = sshll.u32 [#allocation5], 4
          %s133 = int_to_ptr.vmem [resolvable:$true] %s132
          %135 = dma.hbm_to_vmem [thread:$0]  %s1, 64, %s133, [#allocation6]
        $region16: #{tpu_custom_call.1} parent=11 // pred_fallthru
          _
        // Predicated region
        $region17: #{tpu_custom_call.1} parent=11 // pred_check
          %p136 = pneg %p84
        $region18: #{tpu_custom_call.1} parent=11 // pred_check_branch
          %138 = sbr.rel (%p136) target = $region20
        $region19: #{tpu_custom_call.1} parent=11 // pred_region
          %s140 = ssub.s32 64, 64
          %141 = vsyncadd [#allocation6], %s140
          %s143 = sshll.u32 [#allocation7], 4
          %s144 = int_to_ptr.vmem [resolvable:$true] %s143
          %146 = dma.hbm_to_vmem [thread:$0]  %s2, 64, %s144, [#allocation6]
        $region20: #{tpu_custom_call.1} parent=11 // pred_fallthru
          _
      $region12: #{tpu_custom_call.1} parent=5 // pred_fallthru
        _
      %p147 = scmp.lt.s32.totalorder %s16, 2
      // Predicated region
      $region21: #{tpu_custom_call.1} parent=5 // pred_check
        %p148 = pneg %p147
      $region22: #{tpu_custom_call.1} parent=5 // pred_check_branch
        %150 = sbr.rel (%p148) target = $region24
      $region23: #{tpu_custom_call.1} parent=5 // pred_region
        // Predicated region
        $region25: #{tpu_custom_call.1} parent=23 // pred_check
          %p151 = pneg %p36
        $region26: #{tpu_custom_call.1} parent=23 // pred_check_branch
          %153 = sbr.rel (%p151) target = $region28
        $region27: #{tpu_custom_call.1} parent=23 // pred_region
          %s154 = sand.u32 %s26, 1
          %s155 = scalar_lea.sflag [#allocation3], %s154
          %s156 = sand.u32 %s26, 1
          %s157 = smul.addr %s156, 16
          %s158 = scalar_lea.vmem [#allocation2], %s157
          %s160 = ssub.s32 256, 256
          %161 = vsyncadd %s155, %s160
          %s162 = smul.addr %s16, 2
          %s163 = smul.addr %s162, 128
          %s164 = scalar_lea.hbm %s0, %s163
          %s166 = sshll.u32 %s158, 4
          %s167 = int_to_ptr.vmem [resolvable:$true] %s166
          %169 = dma.hbm_to_vmem [thread:$0]  %s164, 256, %s167, %s155
        $region28: #{tpu_custom_call.1} parent=23 // pred_fallthru
          _
      $region24: #{tpu_custom_call.1} parent=5 // pred_fallthru
        _
      %p170 = scmp.le.s32.totalorder 1, %s16
      %p171 = scmp.lt.s32.totalorder %s16, 3
      %p172 = pnand %p170, %p171
      %p173 = pneg %p172
      // Predicated region
      $region29: #{tpu_custom_call.1} parent=5 // pred_check
        _
      $region30: #{tpu_custom_call.1} parent=5 // pred_check_branch
        %175 = sbr.rel (%p172) target = $region32
      $region31: #{tpu_custom_call.1} parent=5 // pred_region
        %s176 = ssub.s32 %s16, 1
        %s177 = sand.u32 %s29, 1
        %s178 = scalar_lea.sflag [#allocation3], %s177
        %s179 = sand.u32 %s29, 1
        %s180 = smul.addr %s179, 16
        %s181 = scalar_lea.vmem [#allocation2], %s180
        // Predicated region
        $region33: #{tpu_custom_call.1} parent=31 // pred_check
          %p182 = pneg %p42
        $region34: #{tpu_custom_call.1} parent=31 // pred_check_branch
          %184 = sbr.rel (%p182) target = $region36
        $region35: #{tpu_custom_call.1} parent=31 // pred_region
          %185 = dma.done %s178, 256
        $region36: #{tpu_custom_call.1} parent=31 // pred_fallthru
          _
        // Predicated region
        $region37: #{tpu_custom_call.1} parent=31 // pred_check
          %p186 = pneg %p63
        $region38: #{tpu_custom_call.1} parent=31 // pred_check_branch
          %188 = sbr.rel (%p186) target = $region40
        $region39: #{tpu_custom_call.1} parent=31 // pred_region
          %189 = dma.done [#allocation6], 64
        $region40: #{tpu_custom_call.1} parent=31 // pred_fallthru
          _
        // Predicated region
        $region41: #{tpu_custom_call.1} parent=31 // pred_check
          %p190 = pneg %p84
        $region42: #{tpu_custom_call.1} parent=31 // pred_check_branch
          %192 = sbr.rel (%p190) target = $region44
        $region43: #{tpu_custom_call.1} parent=31 // pred_region
          %193 = dma.done [#allocation6], 64
        $region44: #{tpu_custom_call.1} parent=31 // pred_fallthru
          _
        %s194 = sand.u32 %s29, 1
        %s195 = scalar_lea.sflag [#allocation3], %s194
        %s196 = sand.u32 %s29, 1
        %s197 = smul.addr %s196, 16
        %s198 = scalar_lea.vmem [#allocation2], %s197
        %p199 = pneg %p42
        %p200 = pneg %p39
        %p201 = pneg %p63
        %p202 = pneg %p60
        %p203 = pneg %p84
        %p204 = pneg %p81
        %p205 = pneg %p110
        %p206 = pneg %p107
        %s207 = sand.u32 %s97, 1
        %s208 = scalar_lea.sflag [#allocation4], %s207
        %s209 = sand.u32 %s97, 1
        %s210 = smul.addr %s209, 16
        %s211 = scalar_lea.vmem [#allocation8], %s210
        %v212 = vld [vmem:[%s181] sm:$0xff]
        %v213 = vld [vmem:[%s181 + $0x8] sm:$0xff]
        %v214 = vld [vmem:[#allocation7] sm:$0xf]
        %v215 = vld [vmem:[#allocation5] sm:$0xf]
        %v217 = vlaneseq
        %v218 = vshrl.u32 %v217, 7
        %v219 = vsub.s32 0, %v218
        %v220 = vrot.slane %v215, %v219
        %v221 = vlaneseq
        %v222 = vshrl.u32 %v221, 7
        %v223 = vsub.s32 2, %v222
        %v224 = vrot.slane %v215, %v223
        %v227 = vlaneseq
        %v228 = vshrl.u32 %v227, 7
        %v229 = vsub.s32 0, %v228
        %v230 = vrot.slane %v220, %v229
        %v231 = vlaneseq
        %v232 = vshrl.u32 %v231, 7
        %v233 = vsub.s32 0, %v232
        %v234 = vrot.slane %v224, %v233
        %v235 = vmul.f32 %v212, %v230
        %v236 = vmul.f32 %v213, %v234
        %v237 = vadd.f32 %v235, %v236
        %238 = vadd.xlane.f32.xlu0 %v237
        %v239 = vpop.xlane.xlu0 %238
        %v240 = vmax.f32 %v239, 0.0
        %v242 = vlaneseq
        %v243 = vshrl.u32 %v242, 7
        %v244 = vsub.s32 0, %v243
        %v245 = vrot.slane %v214, %v244
        %v246 = vlaneseq
        %v247 = vshrl.u32 %v246, 7
        %v248 = vsub.s32 2, %v247
        %v249 = vrot.slane %v214, %v248
        %v252 = vlaneseq
        %v253 = vshrl.u32 %v252, 7
        %v254 = vsub.s32 0, %v253
        %v255 = vrot.slane %v245, %v254
        %v256 = vlaneseq
        %v257 = vshrl.u32 %v256, 7
        %v258 = vsub.s32 0, %v257
        %v259 = vrot.slane %v249, %v258
        %v260 = vmul.f32 %v240, %v255
        %v261 = vmul.f32 %v240, %v259
        %v262 = vlaneseq
        %v263 = vshrl.u32 %v262, 7
        %v264 = vsub.s32 1, %v263
        %v265 = vrot.slane %v215, %v264
        %v266 = vlaneseq
        %v267 = vshrl.u32 %v266, 7
        %v268 = vsub.s32 3, %v267
        %v269 = vrot.slane %v215, %v268
        %v272 = vlaneseq
        %v273 = vshrl.u32 %v272, 7
        %v274 = vsub.s32 1, %v273
        %v275 = vrot.slane %v265, %v274
        %v276 = vlaneseq
        %v277 = vshrl.u32 %v276, 7
        %v278 = vsub.s32 1, %v277
        %v279 = vrot.slane %v269, %v278
        %v280 = vmul.f32 %v212, %v275
        %v281 = vmul.f32 %v213, %v279
        %v282 = vadd.f32 %v280, %v281
        %283 = vadd.xlane.f32.xlu0 %v282
        %v284 = vpop.xlane.xlu0 %283
        %v285 = vmax.f32 %v284, 0.0
        %v286 = vlaneseq
        %v287 = vshrl.u32 %v286, 7
        %v288 = vsub.s32 1, %v287
        %v289 = vrot.slane %v214, %v288
        %v290 = vlaneseq
        %v291 = vshrl.u32 %v290, 7
        %v292 = vsub.s32 3, %v291
        %v293 = vrot.slane %v214, %v292
        %v296 = vlaneseq
        %v297 = vshrl.u32 %v296, 7
        %v298 = vsub.s32 1, %v297
        %v299 = vrot.slane %v289, %v298
        %v300 = vlaneseq
        %v301 = vshrl.u32 %v300, 7
        %v302 = vsub.s32 1, %v301
        %v303 = vrot.slane %v293, %v302
        %v304 = vmul.f32 %v285, %v299
        %v305 = vmul.f32 %v285, %v303
        %v306 = vadd.f32 %v260, %v304
        %v307 = vadd.f32 %v261, %v305
        %v308 = vxor.u32 %v306, 2147483648
        %v309 = vxor.u32 %v307, 2147483648
        %v310 = vmul.f32 %v308, 1.442695
        %v311 = vpow.pop %v310
        %v312 = vmul.f32 %v309, 1.442695
        %v313 = vpow.pop %v312
        %v314 = vadd.f32 %v311, 1.0
        %v315 = vadd.f32 %v313, 1.0
        %v316 = vrcp.pop %v314
        %v317 = vmul.f32 1.0, %v316
        %v318 = vrcp.pop %v315
        %v319 = vmul.f32 1.0, %v318
        %v320 = vmul.f32 %v212, %v317
        %v321 = vmul.f32 %v213, %v319
        %322 = vst [vmem:[%s211] sm:$0xff] %v320
        %323 = vst [vmem:[%s211 + $0x8] sm:$0xff] %v321
        %s324 = sand.u32 %s97, 1
        %s325 = scalar_lea.sflag [#allocation4], %s324
        %s326 = sand.u32 %s97, 1
        %s327 = smul.addr %s326, 16
        %s328 = scalar_lea.vmem [#allocation8], %s327
        // Predicated region
        $region45: #{tpu_custom_call.1} parent=31 // pred_check
          %p329 = pneg %p107
        $region46: #{tpu_custom_call.1} parent=31 // pred_check_branch
          %331 = sbr.rel (%p329) target = $region48
        $region47: #{tpu_custom_call.1} parent=31 // pred_region
          %s333 = ssub.s32 256, 256
          %334 = vsyncadd %s325, %s333
          %s335 = smul.addr %s21, 2
          %s336 = smul.addr %s335, 128
          %s337 = scalar_lea.hbm %s3, %s336
          %s339 = sshll.u32 %s328, 4
          %s340 = int_to_ptr.vmem [resolvable:$true] %s339
          %342 = dma.vmem_to_hbm [thread:$0]  %s340, 256, %s337, %s325
        $region48: #{tpu_custom_call.1} parent=31 // pred_fallthru
          _
      $region32: #{tpu_custom_call.1} parent=5 // pred_fallthru
        _
      %p343 = scmp.le.s32.totalorder 2, %s16
      // Predicated region
      $region49: #{tpu_custom_call.1} parent=5 // pred_check
        %p344 = pneg %p343
      $region50: #{tpu_custom_call.1} parent=5 // pred_check_branch
        %346 = sbr.rel (%p344) target = $region52
      $region51: #{tpu_custom_call.1} parent=5 // pred_region
        %s347 = ssub.s32 %s16, 2
        // Predicated region
        $region53: #{tpu_custom_call.1} parent=51 // pred_check
          %p348 = pneg %p113
        $region54: #{tpu_custom_call.1} parent=51 // pred_check_branch
          %350 = sbr.rel (%p348) target = $region56
        $region55: #{tpu_custom_call.1} parent=51 // pred_region
          %s351 = sand.u32 %s98, 1
          %s352 = scalar_lea.sflag [#allocation4], %s351
          %s353 = sand.u32 %s98, 1
          %s354 = smul.addr %s353, 16
          %s355 = scalar_lea.vmem [#allocation8], %s354
          %356 = dma.done %s352, 256
        $region56: #{tpu_custom_call.1} parent=51 // pred_fallthru
          _
      $region52: #{tpu_custom_call.1} parent=5 // pred_fallthru
        _
    $region6: #{tpu_custom_call.1} parent=1 // loop_footer
      %s20 = sadd.s32 1, %s16
    $region7: #{tpu_custom_call.1} parent=1 // loop_footer_branch
      %15 = sbr.rel target = $region3
    $region8: #{tpu_custom_call.1} parent=1 // loop_exit
      _
    %357 = vsyncpa [#allocation3], 1
    %s358 = scalar_lea.sflag [#allocation3], 1
    %359 = vsyncpa %s358, 1
    %360 = vsyncpa [#allocation6], 1
    %361 = vsyncpa [#allocation4], 1
    %s362 = scalar_lea.sflag [#allocation4], 1
    %363 = vsyncpa %s362, 1

</llo_original>
